<compile_context>
chip_gen: v7x
topology: tpu7x:2x2x1
jax: 0.10.0
libtpu: 0.0.40
codegen_flags: <defaults>
</compile_context>

<pallas_src>
import jax
import jax.numpy as jnp
from jax.experimental import pallas as pl
from jax.experimental.pallas import tpu as pltpu


def _mlp_kernel(x_ref, w1_ref, b1_ref, w2_ref, b2_ref, w3_ref, b3_ref, o_ref):
    # h1 = relu(x @ W1 + b1); matmuls in bf16 on the MXU, f32 accumulate.
    h1 = jnp.dot(x_ref[...], w1_ref[...], preferred_element_type=jnp.float32)
    h1 = jnp.maximum(h1 + b1_ref[...], 0.0)
    # h2 = relu(h1 @ W2 + b2)
    h2 = jnp.dot(h1.astype(jnp.bfloat16), w2_ref[...],
                 preferred_element_type=jnp.float32)
    h2 = jnp.maximum(h2 + b2_ref[...], 0.0)
    # out = h2 @ W3 + b3  (epilogue kept in f32)
    out = jnp.dot(h2.astype(jnp.bfloat16), w3_ref[...],
                  preferred_element_type=jnp.float32)
    o_ref[...] = (out + b3_ref[...]).astype(o_ref.dtype)


def embedding_to_depth(embedding, params, output_size, *, tb=None):
    """embedding: (B, E) float32. Returns (B, 1, H_out, W_out) float32."""
    w1, b1, w2, b2, w3, b3 = params
    B, E = embedding.shape
    H = w1.shape[1]
    O = w3.shape[1]
    assert O == output_size[0] * output_size[1]

    # --- batch-tile selection -------------------------------------------------
    # Small batch: a single grid step (the kernel is overhead-bound there).
    # Large batch: 256-row tiles fill the MXU M dimension (2x128 on v5e,
    # 256 on v6e/v7x) and yield >=2 "parallel" grid steps for v7x megacore.
    if tb is None:
        tb = B if B <= 256 else 256
    tb = max(8, ((tb + 7) // 8) * 8)          # f32/bf16 sublane alignment
    B_pad = ((B + tb - 1) // tb) * tb

    x = embedding.astype(jnp.bfloat16)
    if B_pad != B:
        x = jnp.pad(x, ((0, B_pad - B), (0, 0)))

    # bf16 weights (MXU-native, half the HBM->VMEM bytes); biases stay f32.
    w1b, w2b, w3b = (w.astype(jnp.bfloat16) for w in (w1, w2, w3))
    b1f, b2f, b3f = (b.astype(jnp.float32) for b in (b1, b2, b3))

    grid = (B_pad // tb,)

    # Grid-invariant operands: constant index_map -> single-buffer them.
    def resident(shape):
        return pl.BlockSpec(shape, lambda i: (0, 0),
                            pipeline_mode=pl.Buffered(1))

    flops = 2 * B_pad * (E * H + H * H + H * O)
    bytes_accessed = (B_pad * E * 2              # bf16 activations in
                      + B_pad * O * 4            # f32 output
                      + (E * H + H * H + H * O) * 2   # bf16 weights
                      + (2 * H + O) * 4)         # f32 biases
    cost = pl.CostEstimate(flops=flops, transcendentals=0,
                           bytes_accessed=bytes_accessed)

    depth_flat = pl.pallas_call(
        _mlp_kernel,
        out_shape=jax.ShapeDtypeStruct((B_pad, O), jnp.float32),
        grid_spec=pltpu.PrefetchScalarGridSpec(
            num_scalar_prefetch=0,
            grid=grid,
            in_specs=[
                pl.BlockSpec((tb, E), lambda i: (i, 0)),   # x tile (batch tiled)
                resident((E, H)),                          # W1 (resident)
                resident((1, H)),                          # b1
                resident((H, H)),                          # W2
                resident((1, H)),                          # b2
                resident((H, O)),                          # W3
                resident((1, O)),                          # b3
            ],
            out_specs=pl.BlockSpec((tb, O), lambda i: (i, 0)),
        ),
        compiler_params=pltpu.CompilerParams(
            dimension_semantics=("parallel",),
        ),
        cost_estimate=cost,
    )(x, w1b, b1f, w2b, b2f, w3b, b3f)

    depth_flat = depth_flat[:B]
    # PyTorch: depth.view(-1, 1, H_out, W_out)  (NCHW with C=1)
    return depth_flat.reshape(B, 1, output_size[0], output_size[1])


def init_params(key, embedding_dim, hidden_dim, output_size):
    """Deterministic init mimicking nn.Linear's U(-1/sqrt(fan_in), 1/sqrt(fan_in)).
    Weights stored as (in_features, out_features) so the kernel does x @ W."""
    out_dim = output_size[0] * output_size[1]
    dims = [(embedding_dim, hidden_dim), (hidden_dim, hidden_dim), (hidden_dim, out_dim)]
    params = []
    for fan_in, fan_out in dims:
        key, kw, kb = jax.random.split(key, 3)
        bound = 1.0 / jnp.sqrt(fan_in)
        w = jax.random.uniform(kw, (fan_in, fan_out), jnp.float32, -bound, bound)
        b = jax.random.uniform(kb, (1, fan_out), jnp.float32, -bound, bound)
        params += [w, b]
    return tuple(params)


def reference(embedding, params):
    w1, b1, w2, b2, w3, b3 = params
    h1 = jnp.maximum(embedding @ w1 + b1, 0.0)
    h2 = jnp.maximum(h1 @ w2 + b2, 0.0)
    return h2 @ w3 + b3


if __name__ == "__main__":
    # Small shapes consistent with the module's forward.
    # TODO(synk): at production shapes, consider padding hidden_dim to 128 at
    # the model level so the K dims of W2/W3 are lane-dense.
    batch = 8
    embedding_dim = 32
    hidden_dim = 64
    output_size = (16, 16)

    key = jax.random.PRNGKey(0)
    k_x, k_p = jax.random.split(key)
    x = jax.random.normal(k_x, (batch, embedding_dim), jnp.float32)
    params = init_params(k_p, embedding_dim, hidden_dim, output_size)

    depth = embedding_to_depth(x, params, output_size)
    depth = jax.block_until_ready(depth)

    assert depth.shape == (batch, 1, output_size[0], output_size[1]), depth.shape

    # bf16 matmul operands -> loosen tolerance vs. the f32 reference.
    ref = reference(x, params).reshape(batch, 1, *output_size)
    assert jnp.allclose(depth, ref, atol=2e-2, rtol=2e-2), float(jnp.max(jnp.abs(depth - ref)))

    print("KERNEL_OK")
</pallas_src>

<mosaic_0001>
module attributes {stable_mosaic.version = 11 : i64} {
  func.func @_mlp_kernel(%arg0: i32, %arg1: memref<8x32xbf16, #tpu.memory_space<vmem>>, %arg2: memref<32x64xbf16, #tpu.memory_space<vmem>>, %arg3: memref<1x64xf32, #tpu.memory_space<vmem>>, %arg4: memref<64x64xbf16, #tpu.memory_space<vmem>>, %arg5: memref<1x64xf32, #tpu.memory_space<vmem>>, %arg6: memref<64x256xbf16, #tpu.memory_space<vmem>>, %arg7: memref<1x256xf32, #tpu.memory_space<vmem>>, %arg8: memref<8x256xf32, #tpu.memory_space<vmem>>) attributes {dimension_semantics = [#tpu.dimension_semantics<parallel>], iteration_bounds = array<i64: 1>, scalar_prefetch = 0 : i64, scratch_operands = 0 : i64, tpu.core_type = #tpu.core_type<tc>, window_params = [{transform_indices = @transform_0, window_bounds = array<i64: 8, 32>}, {pipeline_mode = #tpu.pipeline_mode<synchronous>, transform_indices = @transform_1, window_bounds = array<i64: 32, 64>}, {pipeline_mode = #tpu.pipeline_mode<synchronous>, transform_indices = @transform_2, window_bounds = array<i64: 1, 64>}, {pipeline_mode = #tpu.pipeline_mode<synchronous>, transform_indices = @transform_3, window_bounds = array<i64: 64, 64>}, {pipeline_mode = #tpu.pipeline_mode<synchronous>, transform_indices = @transform_4, window_bounds = array<i64: 1, 64>}, {pipeline_mode = #tpu.pipeline_mode<synchronous>, transform_indices = @transform_5, window_bounds = array<i64: 64, 256>}, {pipeline_mode = #tpu.pipeline_mode<synchronous>, transform_indices = @transform_6, window_bounds = array<i64: 1, 256>}, {transform_indices = @transform_7, window_bounds = array<i64: 8, 256>}]} {
    %c0 = arith.constant 0 : index
    %c0_0 = arith.constant 0 : index
    %0 = vector.load %arg1[%c0, %c0_0] : memref<8x32xbf16, #tpu.memory_space<vmem>>, vector<8x32xbf16>
    %c0_1 = arith.constant 0 : index
    %c0_2 = arith.constant 0 : index
    %1 = vector.load %arg2[%c0_1, %c0_2] : memref<32x64xbf16, #tpu.memory_space<vmem>>, vector<32x64xbf16>
    %cst = arith.constant dense<0.000000e+00> : vector<8x64xf32>
    %2 = tpu.matmul %0, %1, %cst {dimension_numbers = #tpu.dot_dimension_numbers<[1], [0], [0], [1], [0, 0, 1, 1], [], []>} : vector<8x32xbf16>, vector<32x64xbf16>, vector<8x64xf32> -> vector<8x64xf32>
    %c0_3 = arith.constant 0 : index
    %c0_4 = arith.constant 0 : index
    %3 = vector.load %arg3[%c0_3, %c0_4] : memref<1x64xf32, #tpu.memory_space<vmem>>, vector<1x64xf32>
    %4 = vector.broadcast %3 : vector<1x64xf32> to vector<8x64xf32>
    %5 = arith.addf %2, %4 : vector<8x64xf32>
    %cst_5 = arith.constant 0.000000e+00 : f32
    %6 = vector.broadcast %cst_5 : f32 to vector<8x64xf32>
    %7 = arith.maximumf %5, %6 : vector<8x64xf32>
    %8 = arith.truncf %7 : vector<8x64xf32> to vector<8x64xbf16>
    %c0_6 = arith.constant 0 : index
    %c0_7 = arith.constant 0 : index
    %9 = vector.load %arg4[%c0_6, %c0_7] : memref<64x64xbf16, #tpu.memory_space<vmem>>, vector<64x64xbf16>
    %cst_8 = arith.constant dense<0.000000e+00> : vector<8x64xf32>
    %10 = tpu.matmul %8, %9, %cst_8 {dimension_numbers = #tpu.dot_dimension_numbers<[1], [0], [0], [1], [0, 0, 1, 1], [], []>} : vector<8x64xbf16>, vector<64x64xbf16>, vector<8x64xf32> -> vector<8x64xf32>
    %c0_9 = arith.constant 0 : index
    %c0_10 = arith.constant 0 : index
    %11 = vector.load %arg5[%c0_9, %c0_10] : memref<1x64xf32, #tpu.memory_space<vmem>>, vector<1x64xf32>
    %12 = vector.broadcast %11 : vector<1x64xf32> to vector<8x64xf32>
    %13 = arith.addf %10, %12 : vector<8x64xf32>
    %cst_11 = arith.constant 0.000000e+00 : f32
    %14 = vector.broadcast %cst_11 : f32 to vector<8x64xf32>
    %15 = arith.maximumf %13, %14 : vector<8x64xf32>
    %16 = arith.truncf %15 : vector<8x64xf32> to vector<8x64xbf16>
    %c0_12 = arith.constant 0 : index
    %c0_13 = arith.constant 0 : index
    %17 = vector.load %arg6[%c0_12, %c0_13] : memref<64x256xbf16, #tpu.memory_space<vmem>>, vector<64x256xbf16>
    %cst_14 = arith.constant dense<0.000000e+00> : vector<8x256xf32>
    %18 = tpu.matmul %16, %17, %cst_14 {dimension_numbers = #tpu.dot_dimension_numbers<[1], [0], [0], [1], [0, 0, 1, 1], [], []>} : vector<8x64xbf16>, vector<64x256xbf16>, vector<8x256xf32> -> vector<8x256xf32>
    %c0_15 = arith.constant 0 : index
    %c0_16 = arith.constant 0 : index
    %19 = vector.load %arg7[%c0_15, %c0_16] : memref<1x256xf32, #tpu.memory_space<vmem>>, vector<1x256xf32>
    %20 = vector.broadcast %19 : vector<1x256xf32> to vector<8x256xf32>
    %21 = arith.addf %18, %20 : vector<8x256xf32>
    %c0_17 = arith.constant 0 : index
    %c0_18 = arith.constant 0 : index
    %22 = vector.load %arg8[%c0_17, %c0_18] : memref<8x256xf32, #tpu.memory_space<vmem>>, vector<8x256xf32>
    tpu.vector_store %arg8[%c0_17, %c0_18], %21 {strides = array<i32>} : memref<8x256xf32, #tpu.memory_space<vmem>>, vector<8x256xf32>,
    return
  }
  func.func @transform_0(%arg0: i32) -> (i32, i32) {
    %c0_i32 = arith.constant 0 : i32
    %c0_i32_0 = arith.constant 0 : i32
    return %arg0, %c0_i32 : i32, i32
  }
  func.func @transform_1(%arg0: i32) -> (i32, i32) {
    %c0_i32 = arith.constant 0 : i32
    %c0_i32_0 = arith.constant 0 : i32
    %c0_i32_1 = arith.constant 0 : i32
    return %c0_i32, %c0_i32_0 : i32, i32
  }
  func.func @transform_2(%arg0: i32) -> (i32, i32) {
    %c0_i32 = arith.constant 0 : i32
    %c0_i32_0 = arith.constant 0 : i32
    %c0_i32_1 = arith.constant 0 : i32
    return %c0_i32, %c0_i32_0 : i32, i32
  }
  func.func @transform_3(%arg0: i32) -> (i32, i32) {
    %c0_i32 = arith.constant 0 : i32
    %c0_i32_0 = arith.constant 0 : i32
    %c0_i32_1 = arith.constant 0 : i32
    return %c0_i32, %c0_i32_0 : i32, i32
  }
  func.func @transform_4(%arg0: i32) -> (i32, i32) {
    %c0_i32 = arith.constant 0 : i32
    %c0_i32_0 = arith.constant 0 : i32
    %c0_i32_1 = arith.constant 0 : i32
    return %c0_i32, %c0_i32_0 : i32, i32
  }
  func.func @transform_5(%arg0: i32) -> (i32, i32) {
    %c0_i32 = arith.constant 0 : i32
    %c0_i32_0 = arith.constant 0 : i32
    %c0_i32_1 = arith.constant 0 : i32
    return %c0_i32, %c0_i32_0 : i32, i32
  }
  func.func @transform_6(%arg0: i32) -> (i32, i32) {
    %c0_i32 = arith.constant 0 : i32
    %c0_i32_0 = arith.constant 0 : i32
    %c0_i32_1 = arith.constant 0 : i32
    return %c0_i32, %c0_i32_0 : i32, i32
  }
  func.func @transform_7(%arg0: i32) -> (i32, i32) {
    %c0_i32 = arith.constant 0 : i32
    %c0_i32_0 = arith.constant 0 : i32
    return %arg0, %c0_i32 : i32, i32
  }
}

</mosaic_0001>

<llo_original>
// kernel: tpu_custom_call.1
$region0: #{tpu_custom_call.1}
  #allocation0 [shape = 'u32[]', space=smem, size = 0x4, offset = 0x4, fixed_abs, tag = 'smem constant byte address 0x4 - core index']
  #allocation1 [shape = 'u32[144,128]{1,0:T(1,128)}', space=vmem, size = 0x12000, scoped, tag = 'internal scratch']
  %s0 = inlined_call_operand.hbm [shape: bf16[8,32], index: 0, kind: input, shape index: {}]
  %s1 = inlined_call_operand.hbm [shape: bf16[32,64], index: 1, kind: input, shape index: {}]
  %s2 = inlined_call_operand.vmem [shape: f32[1,64], index: 2, kind: input, shape index: {}]
  %s3 = inlined_call_operand.hbm [shape: bf16[64,64], index: 3, kind: input, shape index: {}]
  %s4 = inlined_call_operand.vmem [shape: f32[1,64], index: 4, kind: input, shape index: {}]
  %s5 = inlined_call_operand.hbm [shape: bf16[64,256], index: 5, kind: input, shape index: {}]
  %s6 = inlined_call_operand.vmem [shape: f32[1,256], index: 6, kind: input, shape index: {}]
  %s7 = inlined_call_operand.hbm [shape: f32[8,256], index: 7, kind: output, shape index: {}]
  %s8 = sld [smem:[#allocation0]]
  $region54: #{tpu_custom_call.1} parent=0
    _
  %s10 = ssub.s32 1, %s8
  %s11 = scalar_select 0, %s10, %s8
  $region1: #{tpu_custom_call.1} parent=0
    #allocation2 [shape = 'u8[2048]{0}', space=vmem, size = 0x800, scoped, tag = 'input window, operand 0, single buffered']
    #allocation3 [shape = 's32[1]{0}', space=sflag, size = 0x4, scoped, tag = 'scoped memory for tpu_custom_call.1']
    #allocation4 [shape = 's32[1]{0}', space=sflag, size = 0x4, scoped, tag = 'scoped memory for tpu_custom_call.1']
    #allocation5 [shape = 'u8[8192]{0}', space=vmem, size = 0x2000, scoped, tag = 'input window, operand 1, single buffered']
    #allocation6 [shape = 's32[1]{0}', space=sflag, size = 0x4, scoped, tag = 'scoped memory for tpu_custom_call.1']
    #allocation7 [shape = 'u8[16384]{0}', space=vmem, size = 0x4000, scoped, tag = 'input window, operand 3, single buffered']
    #allocation8 [shape = 'u8[32768]{0}', space=vmem, size = 0x8000, scoped, tag = 'input window, operand 5, single buffered']
    #allocation9 [shape = 's32[1]{0}', space=sflag, size = 0x4, scoped, tag = 'scoped memory for tpu_custom_call.1']
    #allocation10 [shape = 'u8[8192]{0}', space=vmem, size = 0x2000, scoped, tag = 'output window, operand 0, single buffered']
    %12 = vsyncpa [#allocation3], 0
    %13 = vsyncpa [#allocation6], 0
    %14 = vsyncpa [#allocation9], 0
    %15 = vsyncpa [#allocation4], 0
    // Predicated region
    $region2: #{tpu_custom_call.1} parent=1 // pred_check
      _
    $region3: #{tpu_custom_call.1} parent=1 // pred_check_branch
      %17 = sbr.rel (0) target = $region5
    $region4: #{tpu_custom_call.1} parent=1 // pred_region
      %s19 = ssub.s32 64, 64
      %20 = vsyncadd [#allocation3], %s19
      %s22 = sshll.u32 [#allocation2], 4
      %s23 = int_to_ptr.vmem [resolvable:$true] %s22
      %25 = dma.hbm_to_vmem [thread:$0]  %s0, 64, %s23, [#allocation3]
    $region5: #{tpu_custom_call.1} parent=1 // pred_fallthru
      _
    // Predicated region
    $region6: #{tpu_custom_call.1} parent=1 // pred_check
      _
    $region7: #{tpu_custom_call.1} parent=1 // pred_check_branch
      %27 = sbr.rel (0) target = $region9
    $region8: #{tpu_custom_call.1} parent=1 // pred_region
      %s29 = ssub.s32 256, 256
      %30 = vsyncadd [#allocation6], %s29
      %s31 = sshll.u32 [#allocation5], 4
      %s32 = int_to_ptr.vmem [resolvable:$true] %s31
      %37 = dma.hbm_to_vmem [thread:$0]  %s1, 256, %s32, [#allocation6], 64, 64, 4
    $region9: #{tpu_custom_call.1} parent=1 // pred_fallthru
      _
    // Predicated region
    $region10: #{tpu_custom_call.1} parent=1 // pred_check
      _
    $region11: #{tpu_custom_call.1} parent=1 // pred_check_branch
      %39 = sbr.rel (0) target = $region13
    $region12: #{tpu_custom_call.1} parent=1 // pred_region
      _
    $region13: #{tpu_custom_call.1} parent=1 // pred_fallthru
      _
    // Predicated region
    $region14: #{tpu_custom_call.1} parent=1 // pred_check
      _
    $region15: #{tpu_custom_call.1} parent=1 // pred_check_branch
      %41 = sbr.rel (0) target = $region17
    $region16: #{tpu_custom_call.1} parent=1 // pred_region
      %s43 = ssub.s32 512, 512
      %44 = vsyncadd [#allocation6], %s43
      %s45 = sshll.u32 [#allocation7], 4
      %s46 = int_to_ptr.vmem [resolvable:$true] %s45
      %51 = dma.hbm_to_vmem [thread:$0]  %s3, 512, %s46, [#allocation6], 64, 64, 4
    $region17: #{tpu_custom_call.1} parent=1 // pred_fallthru
      _
    // Predicated region
    $region18: #{tpu_custom_call.1} parent=1 // pred_check
      _
    $region19: #{tpu_custom_call.1} parent=1 // pred_check_branch
      %53 = sbr.rel (0) target = $region21
    $region20: #{tpu_custom_call.1} parent=1 // pred_region
      _
    $region21: #{tpu_custom_call.1} parent=1 // pred_fallthru
      _
    // Predicated region
    $region22: #{tpu_custom_call.1} parent=1 // pred_check
      _
    $region23: #{tpu_custom_call.1} parent=1 // pred_check_branch
      %55 = sbr.rel (0) target = $region25
    $region24: #{tpu_custom_call.1} parent=1 // pred_region
      %s57 = ssub.s32 1024, 1024
      %58 = vsyncadd [#allocation9], %s57
      %s59 = sshll.u32 [#allocation8], 4
      %s60 = int_to_ptr.vmem [resolvable:$true] %s59
      %65 = dma.hbm_to_vmem [thread:$0]  %s5, 1024, %s60, [#allocation9], 128, 128, 8
    $region25: #{tpu_custom_call.1} parent=1 // pred_fallthru
      _
    // Predicated region
    $region26: #{tpu_custom_call.1} parent=1 // pred_check
      _
    $region27: #{tpu_custom_call.1} parent=1 // pred_check_branch
      %67 = sbr.rel (0) target = $region29
    $region28: #{tpu_custom_call.1} parent=1 // pred_region
      _
    $region29: #{tpu_custom_call.1} parent=1 // pred_fallthru
      _
    // Predicated region
    $region30: #{tpu_custom_call.1} parent=1 // pred_check
      _
    $region31: #{tpu_custom_call.1} parent=1 // pred_check_branch
      %69 = sbr.rel (0) target = $region33
    $region32: #{tpu_custom_call.1} parent=1 // pred_region
      %70 = dma.done [#allocation3], 64
    $region33: #{tpu_custom_call.1} parent=1 // pred_fallthru
      _
    // Predicated region
    $region34: #{tpu_custom_call.1} parent=1 // pred_check
      _
    $region35: #{tpu_custom_call.1} parent=1 // pred_check_branch
      %72 = sbr.rel (0) target = $region37
    $region36: #{tpu_custom_call.1} parent=1 // pred_region
      %73 = dma.done [#allocation6], 256
    $region37: #{tpu_custom_call.1} parent=1 // pred_fallthru
      _
    // Predicated region
    $region38: #{tpu_custom_call.1} parent=1 // pred_check
      _
    $region39: #{tpu_custom_call.1} parent=1 // pred_check_branch
      %75 = sbr.rel (0) target = $region41
    $region40: #{tpu_custom_call.1} parent=1 // pred_region
      %76 = dma.done [#allocation6], 512
    $region41: #{tpu_custom_call.1} parent=1 // pred_fallthru
      _
    // Predicated region
    $region42: #{tpu_custom_call.1} parent=1 // pred_check
      _
    $region43: #{tpu_custom_call.1} parent=1 // pred_check_branch
      %78 = sbr.rel (0) target = $region45
    $region44: #{tpu_custom_call.1} parent=1 // pred_region
      %79 = dma.done [#allocation9], 1024
    $region45: #{tpu_custom_call.1} parent=1 // pred_fallthru
      _
    %v81 = vld [vmem:[#allocation2] sm:$0xf]
    %v82 = vld [vmem:[#allocation5] sm:$0xf]
    %v83 = vld [vmem:[#allocation5 + $0x4] sm:$0xf]
    %v84 = vld [vmem:[#allocation5 + $0x8] sm:$0xf]
    %v85 = vld [vmem:[#allocation5 + $0xc] sm:$0xf]
    %v86 = vld [vmem:[%s2] sm:$0x1]
    %v88 = vlaneseq
    %v89 = vshrl.u32 %v88, 7
    %v90 = vsub.s32 0, %v89
    %v91 = vrot.slane %v86, %v90
    %v97 = vunpack.c.l.b16 %v82
    %v98 = vunpack.c.l.b16 %v83
    %v99 = vunpack.c.l.b16 %v84
    %v100 = vunpack.c.l.b16 %v85
    %v101 = vpack.c.b16 %v98, %v97
    %v102 = vpack.c.b16 %v100, %v99
    %vm105 = vcmask 261120
    %v107 = vsel %vm105, %v81, 0
    %109 = vmatprep.subr.bf16.mxu0 0
    %110 = vmatpush1.bf16.msra.mxu0 %v101
    %111 = vmatprep.subr.bf16.mxu0 0
    %112 = vmatpush1.bf16.msra.mxu0 %v102
    %113 = vmatprep.subr.bf16.mxu0 0
    %114 = vmatpush1.bf16.msra.mxu0 0
    %115 = vmatprep.subr.bf16.mxu0 0
    %116 = vmatpush1.bf16.msra.mxu0 0
    %117 = vmatprep.subr.bf16.mxu0 0
    %118 = vmatpush1.bf16.msra.mxu0 0
    %119 = vmatprep.subr.bf16.mxu0 0
    %120 = vmatpush1.bf16.msra.mxu0 0
    %121 = vmatprep.subr.bf16.mxu0 0
    %122 = vmatpush1.bf16.msra.mxu0 0
    %123 = vmatprep.subr.bf16.mxu0 0
    %124 = vmatpush1.bf16.msra.mxu0 0
    %125 = vmatprep.subr.bf16.mxu0 0
    %126 = vmatpush1.bf16.msra.mxu0 0
    %127 = vmatprep.subr.bf16.mxu0 0
    %128 = vmatpush1.bf16.msra.mxu0 0
    %129 = vmatprep.subr.bf16.mxu0 0
    %130 = vmatpush1.bf16.msra.mxu0 0
    %131 = vmatprep.subr.bf16.mxu0 0
    %132 = vmatpush1.bf16.msra.mxu0 0
    %133 = vmatprep.subr.bf16.mxu0 0
    %134 = vmatpush1.bf16.msra.mxu0 0
    %135 = vmatprep.subr.bf16.mxu0 0
    %136 = vmatpush1.bf16.msra.mxu0 0
    %137 = vmatprep.subr.bf16.mxu0 0
    %138 = vmatpush1.bf16.msra.mxu0 0
    %139 = vmatprep.subr.bf16.mxu0 0
    %140 = vmatpush1.bf16.msra.mxu0 0
    %141 = vmatprep.mubr.bf16.mxu0 0
    %142 = vmatmul.mubr.bf16.gmra.mrb[0].mxu0 %v107
    %v143 = vpop.f32.mrb[0].mxu0
    %v144 = vadd.f32 %v91, %v143
    %v145 = vpop.f32.mrb[0].mxu0
    %v146 = vpop.f32.mrb[0].mxu0
    %v147 = vpop.f32.mrb[0].mxu0
    %148 = vdwg.mxu0
    %v149 = vmax.f32 %v144, 0.0
    %v150 = vpack.c.bf16 %v149, %v149
    %v151 = vld [vmem:[#allocation7] sm:$0xf]
    %v152 = vld [vmem:[#allocation7 + $0x4] sm:$0xf]
    %v153 = vld [vmem:[#allocation7 + $0x8] sm:$0xf]
    %v154 = vld [vmem:[#allocation7 + $0xc] sm:$0xf]
    %v155 = vld [vmem:[#allocation7 + $0x10] sm:$0xf]
    %v156 = vld [vmem:[#allocation7 + $0x14] sm:$0xf]
    %v157 = vld [vmem:[#allocation7 + $0x18] sm:$0xf]
    %v158 = vld [vmem:[#allocation7 + $0x1c] sm:$0xf]
    %v159 = vld [vmem:[%s4] sm:$0x1]
    %v161 = vlaneseq
    %v162 = vshrl.u32 %v161, 7
    %v163 = vsub.s32 0, %v162
    %v164 = vrot.slane %v159, %v163
    %v174 = vunpack.c.l.b16 %v151
    %v175 = vunpack.c.l.b16 %v152
    %v176 = vunpack.c.l.b16 %v153
    %v177 = vunpack.c.l.b16 %v154
    %v178 = vunpack.c.l.b16 %v155
    %v179 = vunpack.c.l.b16 %v156
    %v180 = vunpack.c.l.b16 %v157
    %v181 = vunpack.c.l.b16 %v158
    %v182 = vpack.c.b16 %v175, %v174
    %v183 = vpack.c.b16 %v177, %v176
    %v184 = vpack.c.b16 %v179, %v178
    %v185 = vpack.c.b16 %v181, %v180
    %vm190 = vcmask 523264
    %v192 = vsel %vm190, %v150, 0
    %194 = vmatprep.subr.bf16.mxu0 0
    %195 = vmatpush1.bf16.msra.mxu0 %v182
    %196 = vmatprep.subr.bf16.mxu0 0
    %197 = vmatpush1.bf16.msra.mxu0 %v183
    %198 = vmatprep.subr.bf16.mxu0 0
    %199 = vmatpush1.bf16.msra.mxu0 %v184
    %200 = vmatprep.subr.bf16.mxu0 0
    %201 = vmatpush1.bf16.msra.mxu0 %v185
    %202 = vmatprep.subr.bf16.mxu0 0
    %203 = vmatpush1.bf16.msra.mxu0 0
    %204 = vmatprep.subr.bf16.mxu0 0
    %205 = vmatpush1.bf16.msra.mxu0 0
    %206 = vmatprep.subr.bf16.mxu0 0
    %207 = vmatpush1.bf16.msra.mxu0 0
    %208 = vmatprep.subr.bf16.mxu0 0
    %209 = vmatpush1.bf16.msra.mxu0 0
    %210 = vmatprep.subr.bf16.mxu0 0
    %211 = vmatpush1.bf16.msra.mxu0 0
    %212 = vmatprep.subr.bf16.mxu0 0
    %213 = vmatpush1.bf16.msra.mxu0 0
    %214 = vmatprep.subr.bf16.mxu0 0
    %215 = vmatpush1.bf16.msra.mxu0 0
    %216 = vmatprep.subr.bf16.mxu0 0
    %217 = vmatpush1.bf16.msra.mxu0 0
    %218 = vmatprep.subr.bf16.mxu0 0
    %219 = vmatpush1.bf16.msra.mxu0 0
    %220 = vmatprep.subr.bf16.mxu0 0
    %221 = vmatpush1.bf16.msra.mxu0 0
    %222 = vmatprep.subr.bf16.mxu0 0
    %223 = vmatpush1.bf16.msra.mxu0 0
    %224 = vmatprep.subr.bf16.mxu0 0
    %225 = vmatpush1.bf16.msra.mxu0 0
    %226 = vmatprep.mubr.bf16.mxu0 0
    %227 = vmatmul.mubr.bf16.gmra.mrb[0].mxu0 %v192
    %v228 = vpop.f32.mrb[0].mxu0
    %v229 = vadd.f32 %v164, %v228
    %v230 = vpop.f32.mrb[0].mxu0
    %v231 = vpop.f32.mrb[0].mxu0
    %v232 = vpop.f32.mrb[0].mxu0
    %233 = vdwg.mxu0
    %v234 = vmax.f32 %v229, 0.0
    %v235 = vpack.c.bf16 %v234, %v234
    %v236 = vld [vmem:[#allocation8] sm:$0xff]
    %v237 = vld [vmem:[#allocation8 + $0x8] sm:$0xff]
    %v238 = vld [vmem:[#allocation8 + $0x10] sm:$0xff]
    %v239 = vld [vmem:[#allocation8 + $0x18] sm:$0xff]
    %v240 = vld [vmem:[#allocation8 + $0x20] sm:$0xff]
    %v241 = vld [vmem:[#allocation8 + $0x28] sm:$0xff]
    %v242 = vld [vmem:[#allocation8 + $0x30] sm:$0xff]
    %v243 = vld [vmem:[#allocation8 + $0x38] sm:$0xff]
    %v244 = vld [vmem:[%s6] sm:$0x3]
    %v246 = vlaneseq
    %v247 = vshrl.u32 %v246, 7
    %v248 = vsub.s32 0, %v247
    %v249 = vrot.slane %v244, %v248
    %v250 = vlaneseq
    %v251 = vshrl.u32 %v250, 7
    %v252 = vsub.s32 1, %v251
    %v253 = vrot.slane %v244, %v252
    %v264 = vunpack.c.l.b16 %v236
    %v265 = vunpack.c.h.b16 %v236
    %v266 = vunpack.c.l.b16 %v237
    %v267 = vunpack.c.h.b16 %v237
    %v268 = vunpack.c.l.b16 %v238
    %v269 = vunpack.c.h.b16 %v238
    %v270 = vunpack.c.l.b16 %v239
    %v271 = vunpack.c.h.b16 %v239
    %v272 = vunpack.c.l.b16 %v240
    %v273 = vunpack.c.h.b16 %v240
    %v274 = vunpack.c.l.b16 %v241
    %v275 = vunpack.c.h.b16 %v241
    %v276 = vunpack.c.l.b16 %v242
    %v277 = vunpack.c.h.b16 %v242
    %v278 = vunpack.c.l.b16 %v243
    %v279 = vunpack.c.h.b16 %v243
    %v280 = vpack.c.b16 %v266, %v264
    %v281 = vpack.c.b16 %v267, %v265
    %v282 = vpack.c.b16 %v270, %v268
    %v283 = vpack.c.b16 %v271, %v269
    %v284 = vpack.c.b16 %v274, %v272
    %v285 = vpack.c.b16 %v275, %v273
    %v286 = vpack.c.b16 %v278, %v276
    %v287 = vpack.c.b16 %v279, %v277
    %v297 = vsel %vm190, %v235, 0
    %299 = vmatprep.subr.bf16.mxu0 %v281
    %300 = vmatpush1.bf16.msra.mxu0 %v280
    %301 = vmatprep.subr.bf16.mxu0 %v283
    %302 = vmatpush1.bf16.msra.mxu0 %v282
    %303 = vmatprep.subr.bf16.mxu0 %v285
    %304 = vmatpush1.bf16.msra.mxu0 %v284
    %305 = vmatprep.subr.bf16.mxu0 %v287
    %306 = vmatpush1.bf16.msra.mxu0 %v286
    %307 = vmatprep.subr.bf16.mxu0 0
    %308 = vmatpush1.bf16.msra.mxu0 0
    %309 = vmatprep.subr.bf16.mxu0 0
    %310 = vmatpush1.bf16.msra.mxu0 0
    %311 = vmatprep.subr.bf16.mxu0 0
    %312 = vmatpush1.bf16.msra.mxu0 0
    %313 = vmatprep.subr.bf16.mxu0 0
    %314 = vmatpush1.bf16.msra.mxu0 0
    %315 = vmatprep.subr.bf16.mxu0 0
    %316 = vmatpush1.bf16.msra.mxu0 0
    %317 = vmatprep.subr.bf16.mxu0 0
    %318 = vmatpush1.bf16.msra.mxu0 0
    %319 = vmatprep.subr.bf16.mxu0 0
    %320 = vmatpush1.bf16.msra.mxu0 0
    %321 = vmatprep.subr.bf16.mxu0 0
    %322 = vmatpush1.bf16.msra.mxu0 0
    %323 = vmatprep.subr.bf16.mxu0 0
    %324 = vmatpush1.bf16.msra.mxu0 0
    %325 = vmatprep.subr.bf16.mxu0 0
    %326 = vmatpush1.bf16.msra.mxu0 0
    %327 = vmatprep.subr.bf16.mxu0 0
    %328 = vmatpush1.bf16.msra.mxu0 0
    %329 = vmatprep.subr.bf16.mxu0 0
    %330 = vmatpush1.bf16.msra.mxu0 0
    %331 = vmatprep.mubr.bf16.mxu0 0
    %332 = vmatmul.mubr.bf16.gmra.mrb[0].mxu0 %v297
    %v333 = vpop.f32.mrb[0].mxu0
    %v334 = vadd.f32 %v249, %v333
    %v335 = vpop.f32.mrb[0].mxu0
    %v336 = vadd.f32 %v253, %v335
    %v337 = vpop.f32.mrb[0].mxu0
    %v338 = vpop.f32.mrb[0].mxu0
    %339 = vdwg.mxu0
    %340 = vst [vmem:[#allocation10] sm:$0xff] %v334
    %341 = vst [vmem:[#allocation10 + $0x8] sm:$0xff] %v336
    // Predicated region
    $region46: #{tpu_custom_call.1} parent=1 // pred_check
      _
    $region47: #{tpu_custom_call.1} parent=1 // pred_check_branch
      %343 = sbr.rel (0) target = $region49
    $region48: #{tpu_custom_call.1} parent=1 // pred_region
      %s345 = ssub.s32 256, 256
      %346 = vsyncadd [#allocation4], %s345
      %s348 = sshll.u32 [#allocation10], 4
      %s349 = int_to_ptr.vmem [resolvable:$true] %s348
      %351 = dma.vmem_to_hbm [thread:$0]  %s349, 256, %s7, [#allocation4]
    $region49: #{tpu_custom_call.1} parent=1 // pred_fallthru
      _
    // Predicated region
    $region50: #{tpu_custom_call.1} parent=1 // pred_check
      _
    $region51: #{tpu_custom_call.1} parent=1 // pred_check_branch
      %353 = sbr.rel (0) target = $region53
    $region52: #{tpu_custom_call.1} parent=1 // pred_region
      %354 = dma.done [#allocation4], 256
    $region53: #{tpu_custom_call.1} parent=1 // pred_fallthru
      _
    %355 = vsyncpa [#allocation3], 1
    %356 = vsyncpa [#allocation6], 1
    %357 = vsyncpa [#allocation9], 1
    %358 = vsyncpa [#allocation4], 1

</llo_original>
